<compile_context>
chip_gen: v6e
topology: v6e:2x2x1
jax: 0.10.0
libtpu: 0.0.40
codegen_flags: <defaults>
</compile_context>

<pallas_src>
import numpy as np
import jax
import jax.numpy as jnp
from jax import lax
from jax.experimental import pallas as pl
from jax.experimental.pallas import tpu as pltpu

# Problem sizes (from the PyTorch module)
C_IN = 128
C_OUT = 32
H = 7
W = 7
KH = 3
KW = 3
HW = H * W                  # 49
K_TOTAL = KH * KW * C_IN    # 1152
PAD_OFF = 8                 # lane offset of the image inside the staging slab
PAD_LANES = 128             # slab lane width (>= PAD_OFF + HW + 8)


def _conv3x3_kernel(x_ref, w_ref, o_ref, xpad_ref):
    # x_ref:    (C_IN, HW)        channel-major input (channels->sublanes, spatial->lanes)
    # w_ref:    (C_OUT, K_TOTAL)  lane-dense weights, k = (kh*KW + kw)*C_IN + c
    # o_ref:    (C_OUT, HW)       channel-major output slab (NCHW flattened)
    # xpad_ref: VMEM (C_IN, PAD_LANES) staging slab; ONLY lanes [8, 57) are written.

    x = x_ref[...]                                               # (C_IN, HW) in vregs

    # Stage the image at lane offset 8 so every tap window is a static lane
    # slice.  Halo lanes are intentionally left uninitialized: invalid columns
    # are removed post-dot with a select, which cannot propagate garbage.
    xpad_ref[:, pl.ds(PAD_OFF, HW)] = x

    # Hoisted per-lane validity predicates (a handful of single-vreg VPU ops,
    # computed once per call — no per-tap index reconstruction).
    lane = lax.broadcasted_iota(jnp.int32, (1, HW), 1)
    h_idx = jnp.zeros((1, HW), jnp.int32)
    for r in range(1, H):                                        # h = p // 7 via compares
        h_idx = h_idx + (lane >= r * W).astype(jnp.int32)
    w_idx = lane - W * h_idx                                     # w = p % 7
    row_ok = {-1: lane >= W, 0: None, 1: lane < (H - 1) * W}     # 0 <= h+dh < H
    col_ok = {-1: w_idx >= 1, 0: None, 1: w_idx <= W - 2}        # 0 <= w+dw < W

    # Centre tap first: no mask, straight from the input vregs, seeds the acc.
    t_c = (KH // 2) * KW + (KW // 2)
    acc = jnp.dot(w_ref[:, pl.ds(t_c * C_IN, C_IN)], x,
                  preferred_element_type=jnp.float32)            # (C_OUT, HW)

    # Remaining 8 taps: static lane-shifted window -> K=128 dot -> post-dot mask.
    for kh in range(KH):
        for kw in range(KW):
            if kh == KH // 2 and kw == KW // 2:
                continue
            t = kh * KW + kw
            shift = (kh - 1) * W + (kw - 1)                      # in [-8, 8]
            win = xpad_ref[:, pl.ds(PAD_OFF + shift, HW)]        # (C_IN, HW)
            y = jnp.dot(w_ref[:, pl.ds(t * C_IN, C_IN)], win,
                        preferred_element_type=jnp.float32)      # (C_OUT, HW)
            conds = [c for c in (row_ok[kh - 1], col_ok[kw - 1]) if c is not None]
            valid = conds[0] if len(conds) == 1 else (conds[0] & conds[1])
            # MUST stay a select (not multiply-by-mask): masked columns of `y`
            # may hold NaN/Inf produced from uninitialized halo lanes.
            acc = acc + jnp.where(valid, y, 0.0)

    o_ref[...] = acc.astype(o_ref.dtype)


def prepare_weight(w_oihw):
    """One-time weight prep (hoisted out of the forward path):
    OIHW -> (C_OUT, KH*KW*C_IN) with a lane-dense K axis, k = (kh*KW+kw)*C_IN + c."""
    assert w_oihw.shape == (C_OUT, C_IN, KH, KW)
    return jnp.transpose(w_oihw, (0, 2, 3, 1)).reshape(C_OUT, K_TOTAL)


@jax.jit
def conv2d_3x3_pallas(x_nchw, w2d):
    """x_nchw: (1, C_IN, H, W) f32; w2d: (C_OUT, KH*KW*C_IN) f32 -> (1, C_OUT, H, W)."""
    assert x_nchw.shape == (1, C_IN, H, W)
    assert w2d.shape == (C_OUT, K_TOTAL)

    # Zero-cost reshape: NCHW -> (C_IN, H*W); channels on sublanes, spatial on lanes.
    x2d = x_nchw.reshape(C_IN, HW)

    cost = pl.CostEstimate(
        flops=2 * C_OUT * C_IN * KH * KW * HW,
        transcendentals=0,
        bytes_accessed=4 * (C_IN * HW + C_OUT * K_TOTAL + C_OUT * HW),
    )

    out2d = pl.pallas_call(
        _conv3x3_kernel,
        out_shape=jax.ShapeDtypeStruct((C_OUT, HW), x_nchw.dtype),
        grid=(1,),
        in_specs=[
            pl.BlockSpec((C_IN, HW), lambda i: (0, 0)),
            pl.BlockSpec((C_OUT, K_TOTAL), lambda i: (0, 0)),
        ],
        out_specs=pl.BlockSpec((C_OUT, HW), lambda i: (0, 0)),
        scratch_shapes=[
            pltpu.VMEM((C_IN, PAD_LANES), jnp.float32),   # staging slab (never zero-filled)
        ],
        compiler_params=pltpu.CompilerParams(
            dimension_semantics=("arbitrary",),
        ),
        cost_estimate=cost,
    )(x2d, w2d)

    # Zero-cost reshape back to NCHW.
    return out2d.reshape(1, C_OUT, H, W)


if __name__ == "__main__":
    key = jax.random.PRNGKey(0)
    kx, kw = jax.random.split(key)

    # Deterministic synthetic input / weights (shapes from the module __init__)
    x606 = jax.random.normal(kx, (1, C_IN, H, W), dtype=jnp.float32)
    w171 = jax.random.normal(kw, (C_OUT, C_IN, KH, KW), dtype=jnp.float32) * 0.05

    # One-time weight prep, outside the per-forward path (review item).
    w2d = jax.block_until_ready(prepare_weight(w171))

    out = conv2d_3x3_pallas(x606, w2d)
    out = jax.block_until_ready(out)

    # Cross-check against XLA's conv (same semantics as PyTorch Conv2d with
    # stride=1, padding=1, bias=False).
    ref = lax.conv_general_dilated(
        x606, w171, window_strides=(1, 1), padding=((1, 1), (1, 1)),
        dimension_numbers=("NCHW", "OIHW", "NCHW"),
    )
    ref = jax.block_until_ready(ref)

    assert out.shape == (1, C_OUT, H, W)
    assert jnp.allclose(out, ref, atol=1e-4, rtol=1e-4)

    print("KERNEL_OK")
</pallas_src>

<mosaic_0001>
module attributes {stable_mosaic.version = 11 : i64} {
  func.func @_conv3x3_kernel(%arg0: i32, %arg1: memref<128x49xf32, #tpu.memory_space<vmem>>, %arg2: memref<32x1152xf32, #tpu.memory_space<vmem>>, %arg3: memref<32x49xf32, #tpu.memory_space<vmem>>, %arg4: memref<128x128xf32, #tpu.memory_space<vmem>>) attributes {dimension_semantics = [#tpu.dimension_semantics<arbitrary>], iteration_bounds = array<i64: 1>, scalar_prefetch = 0 : i64, scratch_operands = 1 : i64, tpu.core_type = #tpu.core_type<tc>, window_params = [{pipeline_mode = #tpu.pipeline_mode<synchronous>, transform_indices = @transform_0, window_bounds = array<i64: 128, 49>}, {pipeline_mode = #tpu.pipeline_mode<synchronous>, transform_indices = @transform_1, window_bounds = array<i64: 32, 1152>}, {pipeline_mode = #tpu.pipeline_mode<synchronous>, transform_indices = @transform_2, window_bounds = array<i64: 32, 49>}]} {
    %c0 = arith.constant 0 : index
    %c0_0 = arith.constant 0 : index
    %0 = vector.load %arg1[%c0, %c0_0] : memref<128x49xf32, #tpu.memory_space<vmem>>, vector<128x49xf32>
    %c0_1 = arith.constant 0 : index
    %c8 = arith.constant 8 : index
    %1 = vector.load %arg4[%c0_1, %c8] : memref<128x128xf32, #tpu.memory_space<vmem>>, vector<128x49xf32>
    tpu.vector_store %arg4[%c0_1, %c8], %0 {strides = array<i32>} : memref<128x128xf32, #tpu.memory_space<vmem>>, vector<128x49xf32>,
    %2 = tpu.iota {dimensions = array<i32: 1>} : vector<1x49xi32>
    %c0_i32 = arith.constant 0 : i32
    %3 = vector.broadcast %c0_i32 : i32 to vector<1x49xi32>
    %c7_i32 = arith.constant 7 : i32
    %4 = vector.broadcast %c7_i32 : i32 to vector<1x49xi32>
    %5 = arith.cmpi sge, %2, %4 : vector<1x49xi32>
    %6 = arith.extui %5 : vector<1x49xi1> to vector<1x49xi32>
    %7 = arith.addi %3, %6 : vector<1x49xi32>
    %c14_i32 = arith.constant 14 : i32
    %8 = vector.broadcast %c14_i32 : i32 to vector<1x49xi32>
    %9 = arith.cmpi sge, %2, %8 : vector<1x49xi32>
    %10 = arith.extui %9 : vector<1x49xi1> to vector<1x49xi32>
    %11 = arith.addi %7, %10 : vector<1x49xi32>
    %c21_i32 = arith.constant 21 : i32
    %12 = vector.broadcast %c21_i32 : i32 to vector<1x49xi32>
    %13 = arith.cmpi sge, %2, %12 : vector<1x49xi32>
    %14 = arith.extui %13 : vector<1x49xi1> to vector<1x49xi32>
    %15 = arith.addi %11, %14 : vector<1x49xi32>
    %c28_i32 = arith.constant 28 : i32
    %16 = vector.broadcast %c28_i32 : i32 to vector<1x49xi32>
    %17 = arith.cmpi sge, %2, %16 : vector<1x49xi32>
    %18 = arith.extui %17 : vector<1x49xi1> to vector<1x49xi32>
    %19 = arith.addi %15, %18 : vector<1x49xi32>
    %c35_i32 = arith.constant 35 : i32
    %20 = vector.broadcast %c35_i32 : i32 to vector<1x49xi32>
    %21 = arith.cmpi sge, %2, %20 : vector<1x49xi32>
    %22 = arith.extui %21 : vector<1x49xi1> to vector<1x49xi32>
    %23 = arith.addi %19, %22 : vector<1x49xi32>
    %c42_i32 = arith.constant 42 : i32
    %24 = vector.broadcast %c42_i32 : i32 to vector<1x49xi32>
    %25 = arith.cmpi sge, %2, %24 : vector<1x49xi32>
    %26 = arith.extui %25 : vector<1x49xi1> to vector<1x49xi32>
    %27 = arith.addi %23, %26 : vector<1x49xi32>
    %c7_i32_2 = arith.constant 7 : i32
    %28 = vector.broadcast %c7_i32_2 : i32 to vector<1x49xi32>
    %29 = arith.muli %28, %27 : vector<1x49xi32>
    %30 = arith.subi %2, %29 : vector<1x49xi32>
    %c7_i32_3 = arith.constant 7 : i32
    %31 = vector.broadcast %c7_i32_3 : i32 to vector<1x49xi32>
    %32 = arith.cmpi sge, %2, %31 : vector<1x49xi32>
    %c42_i32_4 = arith.constant 42 : i32
    %33 = vector.broadcast %c42_i32_4 : i32 to vector<1x49xi32>
    %34 = arith.cmpi slt, %2, %33 : vector<1x49xi32>
    %c1_i32 = arith.constant 1 : i32
    %35 = vector.broadcast %c1_i32 : i32 to vector<1x49xi32>
    %36 = arith.cmpi sge, %30, %35 : vector<1x49xi32>
    %c5_i32 = arith.constant 5 : i32
    %37 = vector.broadcast %c5_i32 : i32 to vector<1x49xi32>
    %38 = arith.cmpi sle, %30, %37 : vector<1x49xi32>
    %c0_5 = arith.constant 0 : index
    %c512 = arith.constant 512 : index
    %39 = vector.load %arg2[%c0_5, %c512] : memref<32x1152xf32, #tpu.memory_space<vmem>>, vector<32x128xf32>
    %cst = arith.constant dense<0.000000e+00> : vector<32x49xf32>
    %40 = tpu.matmul %39, %0, %cst {dimension_numbers = #tpu.dot_dimension_numbers<[1], [0], [0], [1], [0, 0, 1, 1], [], []>} : vector<32x128xf32>, vector<128x49xf32>, vector<32x49xf32> -> vector<32x49xf32>
    %c0_6 = arith.constant 0 : index
    %c0_7 = arith.constant 0 : index
    %41 = vector.load %arg4[%c0_6, %c0_7] : memref<128x128xf32, #tpu.memory_space<vmem>>, vector<128x49xf32>
    %c0_8 = arith.constant 0 : index
    %c0_9 = arith.constant 0 : index
    %42 = vector.load %arg2[%c0_8, %c0_9] : memref<32x1152xf32, #tpu.memory_space<vmem>>, vector<32x128xf32>
    %cst_10 = arith.constant dense<0.000000e+00> : vector<32x49xf32>
    %43 = tpu.matmul %42, %41, %cst_10 {dimension_numbers = #tpu.dot_dimension_numbers<[1], [0], [0], [1], [0, 0, 1, 1], [], []>} : vector<32x128xf32>, vector<128x49xf32>, vector<32x49xf32> -> vector<32x49xf32>
    %44 = arith.andi %32, %36 : vector<1x49xi1>
    %cst_11 = arith.constant 0.000000e+00 : f32
    %45 = vector.shape_cast %44 : vector<1x49xi1> to vector<1x49xi1>
    %46 = vector.broadcast %45 : vector<1x49xi1> to vector<32x49xi1>
    %47 = vector.broadcast %cst_11 : f32 to vector<32x49xf32>
    %48 = arith.select %46, %43, %47 : vector<32x49xi1>, vector<32x49xf32>
    %49 = arith.addf %40, %48 : vector<32x49xf32>
    %c0_12 = arith.constant 0 : index
    %c1 = arith.constant 1 : index
    %50 = vector.load %arg4[%c0_12, %c1] : memref<128x128xf32, #tpu.memory_space<vmem>>, vector<128x49xf32>
    %c0_13 = arith.constant 0 : index
    %c128 = arith.constant 128 : index
    %51 = vector.load %arg2[%c0_13, %c128] : memref<32x1152xf32, #tpu.memory_space<vmem>>, vector<32x128xf32>
    %cst_14 = arith.constant dense<0.000000e+00> : vector<32x49xf32>
    %52 = tpu.matmul %51, %50, %cst_14 {dimension_numbers = #tpu.dot_dimension_numbers<[1], [0], [0], [1], [0, 0, 1, 1], [], []>} : vector<32x128xf32>, vector<128x49xf32>, vector<32x49xf32> -> vector<32x49xf32>
    %cst_15 = arith.constant 0.000000e+00 : f32
    %53 = vector.shape_cast %32 : vector<1x49xi1> to vector<1x49xi1>
    %54 = vector.broadcast %53 : vector<1x49xi1> to vector<32x49xi1>
    %55 = vector.broadcast %cst_15 : f32 to vector<32x49xf32>
    %56 = arith.select %54, %52, %55 : vector<32x49xi1>, vector<32x49xf32>
    %57 = arith.addf %49, %56 : vector<32x49xf32>
    %c0_16 = arith.constant 0 : index
    %c2 = arith.constant 2 : index
    %58 = vector.load %arg4[%c0_16, %c2] : memref<128x128xf32, #tpu.memory_space<vmem>>, vector<128x49xf32>
    %c0_17 = arith.constant 0 : index
    %c256 = arith.constant 256 : index
    %59 = vector.load %arg2[%c0_17, %c256] : memref<32x1152xf32, #tpu.memory_space<vmem>>, vector<32x128xf32>
    %cst_18 = arith.constant dense<0.000000e+00> : vector<32x49xf32>
    %60 = tpu.matmul %59, %58, %cst_18 {dimension_numbers = #tpu.dot_dimension_numbers<[1], [0], [0], [1], [0, 0, 1, 1], [], []>} : vector<32x128xf32>, vector<128x49xf32>, vector<32x49xf32> -> vector<32x49xf32>
    %61 = arith.andi %32, %38 : vector<1x49xi1>
    %cst_19 = arith.constant 0.000000e+00 : f32
    %62 = vector.shape_cast %61 : vector<1x49xi1> to vector<1x49xi1>
    %63 = vector.broadcast %62 : vector<1x49xi1> to vector<32x49xi1>
    %64 = vector.broadcast %cst_19 : f32 to vector<32x49xf32>
    %65 = arith.select %63, %60, %64 : vector<32x49xi1>, vector<32x49xf32>
    %66 = arith.addf %57, %65 : vector<32x49xf32>
    %c0_20 = arith.constant 0 : index
    %c7 = arith.constant 7 : index
    %67 = vector.load %arg4[%c0_20, %c7] : memref<128x128xf32, #tpu.memory_space<vmem>>, vector<128x49xf32>
    %c0_21 = arith.constant 0 : index
    %c384 = arith.constant 384 : index
    %68 = vector.load %arg2[%c0_21, %c384] : memref<32x1152xf32, #tpu.memory_space<vmem>>, vector<32x128xf32>
    %cst_22 = arith.constant dense<0.000000e+00> : vector<32x49xf32>
    %69 = tpu.matmul %68, %67, %cst_22 {dimension_numbers = #tpu.dot_dimension_numbers<[1], [0], [0], [1], [0, 0, 1, 1], [], []>} : vector<32x128xf32>, vector<128x49xf32>, vector<32x49xf32> -> vector<32x49xf32>
    %cst_23 = arith.constant 0.000000e+00 : f32
    %70 = vector.shape_cast %36 : vector<1x49xi1> to vector<1x49xi1>
    %71 = vector.broadcast %70 : vector<1x49xi1> to vector<32x49xi1>
    %72 = vector.broadcast %cst_23 : f32 to vector<32x49xf32>
    %73 = arith.select %71, %69, %72 : vector<32x49xi1>, vector<32x49xf32>
    %74 = arith.addf %66, %73 : vector<32x49xf32>
    %c0_24 = arith.constant 0 : index
    %c9 = arith.constant 9 : index
    %75 = vector.load %arg4[%c0_24, %c9] : memref<128x128xf32, #tpu.memory_space<vmem>>, vector<128x49xf32>
    %c0_25 = arith.constant 0 : index
    %c640 = arith.constant 640 : index
    %76 = vector.load %arg2[%c0_25, %c640] : memref<32x1152xf32, #tpu.memory_space<vmem>>, vector<32x128xf32>
    %cst_26 = arith.constant dense<0.000000e+00> : vector<32x49xf32>
    %77 = tpu.matmul %76, %75, %cst_26 {dimension_numbers = #tpu.dot_dimension_numbers<[1], [0], [0], [1], [0, 0, 1, 1], [], []>} : vector<32x128xf32>, vector<128x49xf32>, vector<32x49xf32> -> vector<32x49xf32>
    %cst_27 = arith.constant 0.000000e+00 : f32
    %78 = vector.shape_cast %38 : vector<1x49xi1> to vector<1x49xi1>
    %79 = vector.broadcast %78 : vector<1x49xi1> to vector<32x49xi1>
    %80 = vector.broadcast %cst_27 : f32 to vector<32x49xf32>
    %81 = arith.select %79, %77, %80 : vector<32x49xi1>, vector<32x49xf32>
    %82 = arith.addf %74, %81 : vector<32x49xf32>
    %c0_28 = arith.constant 0 : index
    %c14 = arith.constant 14 : index
    %83 = vector.load %arg4[%c0_28, %c14] : memref<128x128xf32, #tpu.memory_space<vmem>>, vector<128x49xf32>
    %c0_29 = arith.constant 0 : index
    %c768 = arith.constant 768 : index
    %84 = vector.load %arg2[%c0_29, %c768] : memref<32x1152xf32, #tpu.memory_space<vmem>>, vector<32x128xf32>
    %cst_30 = arith.constant dense<0.000000e+00> : vector<32x49xf32>
    %85 = tpu.matmul %84, %83, %cst_30 {dimension_numbers = #tpu.dot_dimension_numbers<[1], [0], [0], [1], [0, 0, 1, 1], [], []>} : vector<32x128xf32>, vector<128x49xf32>, vector<32x49xf32> -> vector<32x49xf32>
    %86 = arith.andi %34, %36 : vector<1x49xi1>
    %cst_31 = arith.constant 0.000000e+00 : f32
    %87 = vector.shape_cast %86 : vector<1x49xi1> to vector<1x49xi1>
    %88 = vector.broadcast %87 : vector<1x49xi1> to vector<32x49xi1>
    %89 = vector.broadcast %cst_31 : f32 to vector<32x49xf32>
    %90 = arith.select %88, %85, %89 : vector<32x49xi1>, vector<32x49xf32>
    %91 = arith.addf %82, %90 : vector<32x49xf32>
    %c0_32 = arith.constant 0 : index
    %c15 = arith.constant 15 : index
    %92 = vector.load %arg4[%c0_32, %c15] : memref<128x128xf32, #tpu.memory_space<vmem>>, vector<128x49xf32>
    %c0_33 = arith.constant 0 : index
    %c896 = arith.constant 896 : index
    %93 = vector.load %arg2[%c0_33, %c896] : memref<32x1152xf32, #tpu.memory_space<vmem>>, vector<32x128xf32>
    %cst_34 = arith.constant dense<0.000000e+00> : vector<32x49xf32>
    %94 = tpu.matmul %93, %92, %cst_34 {dimension_numbers = #tpu.dot_dimension_numbers<[1], [0], [0], [1], [0, 0, 1, 1], [], []>} : vector<32x128xf32>, vector<128x49xf32>, vector<32x49xf32> -> vector<32x49xf32>
    %cst_35 = arith.constant 0.000000e+00 : f32
    %95 = vector.shape_cast %34 : vector<1x49xi1> to vector<1x49xi1>
    %96 = vector.broadcast %95 : vector<1x49xi1> to vector<32x49xi1>
    %97 = vector.broadcast %cst_35 : f32 to vector<32x49xf32>
    %98 = arith.select %96, %94, %97 : vector<32x49xi1>, vector<32x49xf32>
    %99 = arith.addf %91, %98 : vector<32x49xf32>
    %c0_36 = arith.constant 0 : index
    %c16 = arith.constant 16 : index
    %100 = vector.load %arg4[%c0_36, %c16] : memref<128x128xf32, #tpu.memory_space<vmem>>, vector<128x49xf32>
    %c0_37 = arith.constant 0 : index
    %c1024 = arith.constant 1024 : index
    %101 = vector.load %arg2[%c0_37, %c1024] : memref<32x1152xf32, #tpu.memory_space<vmem>>, vector<32x128xf32>
    %cst_38 = arith.constant dense<0.000000e+00> : vector<32x49xf32>
    %102 = tpu.matmul %101, %100, %cst_38 {dimension_numbers = #tpu.dot_dimension_numbers<[1], [0], [0], [1], [0, 0, 1, 1], [], []>} : vector<32x128xf32>, vector<128x49xf32>, vector<32x49xf32> -> vector<32x49xf32>
    %103 = arith.andi %34, %38 : vector<1x49xi1>
    %cst_39 = arith.constant 0.000000e+00 : f32
    %104 = vector.shape_cast %103 : vector<1x49xi1> to vector<1x49xi1>
    %105 = vector.broadcast %104 : vector<1x49xi1> to vector<32x49xi1>
    %106 = vector.broadcast %cst_39 : f32 to vector<32x49xf32>
    %107 = arith.select %105, %102, %106 : vector<32x49xi1>, vector<32x49xf32>
    %108 = arith.addf %99, %107 : vector<32x49xf32>
    %c0_40 = arith.constant 0 : index
    %c0_41 = arith.constant 0 : index
    %109 = vector.load %arg3[%c0_40, %c0_41] : memref<32x49xf32, #tpu.memory_space<vmem>>, vector<32x49xf32>
    tpu.vector_store %arg3[%c0_40, %c0_41], %108 {strides = array<i32>} : memref<32x49xf32, #tpu.memory_space<vmem>>, vector<32x49xf32>,
    return
  }
  func.func @transform_0(%arg0: i32) -> (i32, i32) {
    %c0_i32 = arith.constant 0 : i32
    %c0_i32_0 = arith.constant 0 : i32
    %c0_i32_1 = arith.constant 0 : i32
    return %c0_i32, %c0_i32_0 : i32, i32
  }
  func.func @transform_1(%arg0: i32) -> (i32, i32) {
    %c0_i32 = arith.constant 0 : i32
    %c0_i32_0 = arith.constant 0 : i32
    %c0_i32_1 = arith.constant 0 : i32
    return %c0_i32, %c0_i32_0 : i32, i32
  }
  func.func @transform_2(%arg0: i32) -> (i32, i32) {
    %c0_i32 = arith.constant 0 : i32
    %c0_i32_0 = arith.constant 0 : i32
    %c0_i32_1 = arith.constant 0 : i32
    return %c0_i32, %c0_i32_0 : i32, i32
  }
}

</mosaic_0001>

<llo_original>
// kernel: conv2d_3x3_pallas.1
$region0: #{conv2d_3x3_pallas.1}
  #allocation0 [shape = 'u32[]', space=smem, size = 0x4, offset = 0x4, fixed_abs, tag = 'smem constant byte address 0x4 - core index']
  #allocation1 [shape = 'u32[144,128]{1,0:T(1,128)}', space=vmem, size = 0x12000, scoped, tag = 'internal scratch']
  #allocation2 [shape = 'f32[128,128]{1,0:T(8,128)}', space=vmem, size = 0x10000, scoped, tag = 'scratch operand']
  %s0 = inlined_call_operand.vmem [shape: f32[128,49], index: 0, kind: input, shape index: {}]
  %s1 = inlined_call_operand.vmem [shape: f32[32,1152], index: 1, kind: input, shape index: {}]
  %s2 = inlined_call_operand.vmem [shape: f32[32,49], index: 2, kind: output, shape index: {}]
  %s3 = sld [smem:[#allocation0]]
  $region18: #{conv2d_3x3_pallas.1} parent=0
    _
  %s5 = ssub.s32 1, %s3
  %s6 = scalar_select 0, %s5, %s3
  // Predicated region
  $region2: #{conv2d_3x3_pallas.1} parent=0 // pred_check
    _
  $region3: #{conv2d_3x3_pallas.1} parent=0 // pred_check_branch
    %8 = sbr.rel (0) target = $region5
  $region4: #{conv2d_3x3_pallas.1} parent=0 // pred_region
    _
  $region5: #{conv2d_3x3_pallas.1} parent=0 // pred_fallthru
    _
  // Predicated region
  $region6: #{conv2d_3x3_pallas.1} parent=0 // pred_check
    _
  $region7: #{conv2d_3x3_pallas.1} parent=0 // pred_check_branch
    %10 = sbr.rel (0) target = $region9
  $region8: #{conv2d_3x3_pallas.1} parent=0 // pred_region
    _
  $region9: #{conv2d_3x3_pallas.1} parent=0 // pred_fallthru
    _
  %v11 = vld [vmem:[%s0] sm:$0xff]
  %v12 = vld [vmem:[%s0 + $0x8] sm:$0xff]
  %v13 = vld [vmem:[%s0 + $0x10] sm:$0xff]
  %v14 = vld [vmem:[%s0 + $0x18] sm:$0xff]
  %v15 = vld [vmem:[%s0 + $0x20] sm:$0xff]
  %v16 = vld [vmem:[%s0 + $0x28] sm:$0xff]
  %v17 = vld [vmem:[%s0 + $0x30] sm:$0xff]
  %v18 = vld [vmem:[%s0 + $0x38] sm:$0xff]
  %v19 = vld [vmem:[%s0 + $0x40] sm:$0xff]
  %v20 = vld [vmem:[%s0 + $0x48] sm:$0xff]
  %v21 = vld [vmem:[%s0 + $0x50] sm:$0xff]
  %v22 = vld [vmem:[%s0 + $0x58] sm:$0xff]
  %v23 = vld [vmem:[%s0 + $0x60] sm:$0xff]
  %v24 = vld [vmem:[%s0 + $0x68] sm:$0xff]
  %v25 = vld [vmem:[%s0 + $0x70] sm:$0xff]
  %v26 = vld [vmem:[%s0 + $0x78] sm:$0xff]
  %43 = vrot.lane.b32.xlu0 %v11, 8
  %v44 = vpop.permute.xlu0 %43
  %45 = vrot.lane.b32.xlu0 %v12, 8
  %v46 = vpop.permute.xlu0 %45
  %47 = vrot.lane.b32.xlu0 %v13, 8
  %v48 = vpop.permute.xlu0 %47
  %49 = vrot.lane.b32.xlu0 %v14, 8
  %v50 = vpop.permute.xlu0 %49
  %51 = vrot.lane.b32.xlu0 %v15, 8
  %v52 = vpop.permute.xlu0 %51
  %53 = vrot.lane.b32.xlu0 %v16, 8
  %v54 = vpop.permute.xlu0 %53
  %55 = vrot.lane.b32.xlu0 %v17, 8
  %v56 = vpop.permute.xlu0 %55
  %57 = vrot.lane.b32.xlu0 %v18, 8
  %v58 = vpop.permute.xlu0 %57
  %59 = vrot.lane.b32.xlu0 %v19, 8
  %v60 = vpop.permute.xlu0 %59
  %61 = vrot.lane.b32.xlu0 %v20, 8
  %v62 = vpop.permute.xlu0 %61
  %63 = vrot.lane.b32.xlu0 %v21, 8
  %v64 = vpop.permute.xlu0 %63
  %65 = vrot.lane.b32.xlu0 %v22, 8
  %v66 = vpop.permute.xlu0 %65
  %67 = vrot.lane.b32.xlu0 %v23, 8
  %v68 = vpop.permute.xlu0 %67
  %69 = vrot.lane.b32.xlu0 %v24, 8
  %v70 = vpop.permute.xlu0 %69
  %71 = vrot.lane.b32.xlu0 %v25, 8
  %v72 = vpop.permute.xlu0 %71
  %73 = vrot.lane.b32.xlu0 %v26, 8
  %v74 = vpop.permute.xlu0 %73
  %vm91 = vcmask 465984
  %92 = vst.msk [vmem:[#allocation2] sm:$0xff] %vm91, %v44
  %93 = vst.msk [vmem:[#allocation2 + $0x8] sm:$0xff] %vm91, %v46
  %94 = vst.msk [vmem:[#allocation2 + $0x10] sm:$0xff] %vm91, %v48
  %95 = vst.msk [vmem:[#allocation2 + $0x18] sm:$0xff] %vm91, %v50
  %96 = vst.msk [vmem:[#allocation2 + $0x20] sm:$0xff] %vm91, %v52
  %97 = vst.msk [vmem:[#allocation2 + $0x28] sm:$0xff] %vm91, %v54
  %98 = vst.msk [vmem:[#allocation2 + $0x30] sm:$0xff] %vm91, %v56
  %99 = vst.msk [vmem:[#allocation2 + $0x38] sm:$0xff] %vm91, %v58
  %100 = vst.msk [vmem:[#allocation2 + $0x40] sm:$0xff] %vm91, %v60
  %101 = vst.msk [vmem:[#allocation2 + $0x48] sm:$0xff] %vm91, %v62
  %102 = vst.msk [vmem:[#allocation2 + $0x50] sm:$0xff] %vm91, %v64
  %103 = vst.msk [vmem:[#allocation2 + $0x58] sm:$0xff] %vm91, %v66
  %104 = vst.msk [vmem:[#allocation2 + $0x60] sm:$0xff] %vm91, %v68
  %105 = vst.msk [vmem:[#allocation2 + $0x68] sm:$0xff] %vm91, %v70
  %106 = vst.msk [vmem:[#allocation2 + $0x70] sm:$0xff] %vm91, %v72
  %107 = vst.msk [vmem:[#allocation2 + $0x78] sm:$0xff] %vm91, %v74
  %v108 = vlaneseq
  %v109 = vand.u32 %v108, 127
  %vm110 = vcmp.ge.s32.totalorder %v109, 7
  %v111 = vsel %vm110, 1, 0
  %vm112 = vcmp.ge.s32.totalorder %v109, 14
  %v113 = vsel %vm112, 1, 0
  %v114 = vadd.s32 %v111, %v113
  %vm115 = vcmp.ge.s32.totalorder %v109, 21
  %v116 = vsel %vm115, 1, 0
  %v117 = vadd.s32 %v114, %v116
  %vm118 = vcmp.ge.s32.totalorder %v109, 28
  %v119 = vsel %vm118, 1, 0
  %v120 = vadd.s32 %v117, %v119
  %vm121 = vcmp.ge.s32.totalorder %v109, 35
  %v122 = vsel %vm121, 1, 0
  %v123 = vadd.s32 %v120, %v122
  %vm124 = vcmp.ge.s32.totalorder %v109, 42
  %v125 = vsel %vm124, 1, 0
  %v126 = vadd.s32 %v123, %v125
  %v127 = vmul.u32 %v126, 7
  %v128 = vsub.s32 %v109, %v127
  %vm129 = vcmp.lt.s32.totalorder %v109, 42
  %vm130 = vcmp.ge.s32.totalorder %v128, 1
  %vm131 = vcmp.le.s32.totalorder %v128, 5
  %v132 = vld [vmem:[%s1 + $0x20] sm:$0xff]
  %v133 = vld [vmem:[%s1 + $0x68] sm:$0xff]
  %v134 = vld [vmem:[%s1 + $0xb0] sm:$0xff]
  %v135 = vld [vmem:[%s1 + $0xf8] sm:$0xff]
  %v136 = vld [vmem:[#allocation2] sm:$0xff]
  %v137 = vld [vmem:[#allocation2 + $0x8] sm:$0xff]
  %v138 = vld [vmem:[#allocation2 + $0x10] sm:$0xff]
  %v139 = vld [vmem:[#allocation2 + $0x18] sm:$0xff]
  %v140 = vld [vmem:[#allocation2 + $0x20] sm:$0xff]
  %v141 = vld [vmem:[#allocation2 + $0x28] sm:$0xff]
  %v142 = vld [vmem:[#allocation2 + $0x30] sm:$0xff]
  %v143 = vld [vmem:[#allocation2 + $0x38] sm:$0xff]
  %v144 = vld [vmem:[#allocation2 + $0x40] sm:$0xff]
  %v145 = vld [vmem:[#allocation2 + $0x48] sm:$0xff]
  %v146 = vld [vmem:[#allocation2 + $0x50] sm:$0xff]
  %v147 = vld [vmem:[#allocation2 + $0x58] sm:$0xff]
  %v148 = vld [vmem:[#allocation2 + $0x60] sm:$0xff]
  %v149 = vld [vmem:[#allocation2 + $0x68] sm:$0xff]
  %v150 = vld [vmem:[#allocation2 + $0x70] sm:$0xff]
  %v151 = vld [vmem:[#allocation2 + $0x78] sm:$0xff]
  %v152 = vld [vmem:[%s1] sm:$0xff]
  %v153 = vld [vmem:[%s1 + $0x48] sm:$0xff]
  %v154 = vld [vmem:[%s1 + $0x90] sm:$0xff]
  %v155 = vld [vmem:[%s1 + $0xd8] sm:$0xff]
  %156 = vmatprep.subr.mxu0 0.0
  %157 = vmatpush1.msra.mxu0 %v151
  %158 = vmatprep.subr.mxu0 0.0
  %159 = vmatpush1.msra.mxu0 %v150
  %160 = vmatprep.subr.mxu0 0.0
  %161 = vmatpush1.msra.mxu0 %v149
  %162 = vmatprep.subr.mxu0 0.0
  %163 = vmatpush1.msra.mxu0 %v148
  %164 = vmatprep.subr.mxu0 0.0
  %165 = vmatpush1.msra.mxu0 %v147
  %166 = vmatprep.subr.mxu0 0.0
  %167 = vmatpush1.msra.mxu0 %v146
  %168 = vmatprep.subr.mxu0 0.0
  %169 = vmatpush1.msra.mxu0 %v145
  %170 = vmatprep.subr.mxu0 0.0
  %171 = vmatpush1.msra.mxu0 %v144
  %172 = vmatprep.subr.mxu0 0.0
  %173 = vmatpush1.msra.mxu0 %v143
  %174 = vmatprep.subr.mxu0 0.0
  %175 = vmatpush1.msra.mxu0 %v142
  %176 = vmatprep.subr.mxu0 0.0
  %177 = vmatpush1.msra.mxu0 %v141
  %178 = vmatprep.subr.mxu0 0.0
  %179 = vmatpush1.msra.mxu0 %v140
  %180 = vmatprep.subr.mxu0 0.0
  %181 = vmatpush1.msra.mxu0 %v139
  %182 = vmatprep.subr.mxu0 0.0
  %183 = vmatpush1.msra.mxu0 %v138
  %184 = vmatprep.subr.mxu0 0.0
  %185 = vmatpush1.msra.mxu0 %v137
  %186 = vmatprep.subr.mxu0 0.0
  %187 = vmatpush1.msra.mxu0 %v136
  %188 = vmatprep.subr.mxu0 0.0
  %189 = vmatpush2.msra.mxu0 0.0
  %190 = vmatprep.subr.mxu0 0.0
  %191 = vmatpush2.msra.mxu0 0.0
  %192 = vmatprep.subr.mxu0 0.0
  %193 = vmatpush2.msra.mxu0 0.0
  %194 = vmatprep.subr.mxu0 0.0
  %195 = vmatpush2.msra.mxu0 0.0
  %196 = vmatprep.subr.mxu0 0.0
  %197 = vmatpush2.msra.mxu0 0.0
  %198 = vmatprep.subr.mxu0 0.0
  %199 = vmatpush2.msra.mxu0 0.0
  %200 = vmatprep.subr.mxu0 0.0
  %201 = vmatpush2.msra.mxu0 0.0
  %202 = vmatprep.subr.mxu0 0.0
  %203 = vmatpush2.msra.mxu0 0.0
  %204 = vmatprep.subr.mxu0 0.0
  %205 = vmatpush2.msra.mxu0 0.0
  %206 = vmatprep.subr.mxu0 0.0
  %207 = vmatpush2.msra.mxu0 0.0
  %208 = vmatprep.subr.mxu0 0.0
  %209 = vmatpush2.msra.mxu0 0.0
  %210 = vmatprep.subr.mxu0 0.0
  %211 = vmatpush2.msra.mxu0 0.0
  %212 = vmatprep.subr.mxu0 0.0
  %213 = vmatpush2.msra.mxu0 0.0
  %214 = vmatprep.subr.mxu0 0.0
  %215 = vmatpush2.msra.mxu0 0.0
  %216 = vmatprep.subr.mxu0 0.0
  %217 = vmatpush2.msra.mxu0 0.0
  %218 = vmatprep.subr.mxu0 0.0
  %219 = vmatpush2.msra.mxu0 0.0
  %220 = vmatprep.mubr.f32.mxu0 0.0
  %221 = vmatmul.mubr.f32.gmra.mxu0 %v152
  %v222 = vpop.f32.mrf.mxu0
  %v223 = vadd.f32 0.0, %v222
  %v224 = vpop.f32.mrf.mxu0
  %225 = vmatprep.mubr.f32.mxu0 0.0
  %226 = vmatmul.mubr.f32.gmra.mxu0 %v153
  %v227 = vpop.f32.mrf.mxu0
  %v228 = vadd.f32 0.0, %v227
  %v229 = vpop.f32.mrf.mxu0
  %230 = vmatprep.mubr.f32.mxu0 0.0
  %231 = vmatmul.mubr.f32.gmra.mxu0 %v154
  %v232 = vpop.f32.mrf.mxu0
  %v233 = vadd.f32 0.0, %v232
  %v234 = vpop.f32.mrf.mxu0
  %235 = vmatprep.mubr.f32.mxu0 0.0
  %236 = vmatmul.mubr.f32.gmra.mxu0 %v155
  %v237 = vpop.f32.mrf.mxu0
  %v238 = vadd.f32 0.0, %v237
  %v239 = vpop.f32.mrf.mxu0
  %240 = vdwg.mxu0
  %vm241 = vmand %vm110, %vm130
  %v242 = vsel %vm241, 1, 0
  %vm243 = vcmp.eq.s32.totalorder %v242, 1
  %v244 = vsel %vm243, %v223, 0.0
  %v245 = vsel %vm243, %v228, 0.0
  %v246 = vsel %vm243, %v233, 0.0
  %v247 = vsel %vm243, %v238, 0.0
  %248 = vmatprep.subr.mxu0 0.0
  %249 = vmatpush1.msra.mxu0 %v26
  %250 = vmatprep.subr.mxu0 0.0
  %251 = vmatpush1.msra.mxu0 %v25
  %252 = vmatprep.subr.mxu0 0.0
  %253 = vmatpush1.msra.mxu0 %v24
  %254 = vmatprep.subr.mxu0 0.0
  %255 = vmatpush1.msra.mxu0 %v23
  %256 = vmatprep.subr.mxu0 0.0
  %257 = vmatpush1.msra.mxu0 %v22
  %258 = vmatprep.subr.mxu0 0.0
  %259 = vmatpush1.msra.mxu0 %v21
  %260 = vmatprep.subr.mxu0 0.0
  %261 = vmatpush1.msra.mxu0 %v20
  %262 = vmatprep.subr.mxu0 0.0
  %263 = vmatpush1.msra.mxu0 %v19
  %264 = vmatprep.subr.mxu0 0.0
  %265 = vmatpush1.msra.mxu0 %v18
  %266 = vmatprep.subr.mxu0 0.0
  %267 = vmatpush1.msra.mxu0 %v17
  %268 = vmatprep.subr.mxu0 0.0
  %269 = vmatpush1.msra.mxu0 %v16
  %270 = vmatprep.subr.mxu0 0.0
  %271 = vmatpush1.msra.mxu0 %v15
  %272 = vmatprep.subr.mxu0 0.0
  %273 = vmatpush1.msra.mxu0 %v14
  %274 = vmatprep.subr.mxu0 0.0
  %275 = vmatpush1.msra.mxu0 %v13
  %276 = vmatprep.subr.mxu0 0.0
  %277 = vmatpush1.msra.mxu0 %v12
  %278 = vmatprep.subr.mxu0 0.0
  %279 = vmatpush1.msra.mxu0 %v11
  %280 = vmatprep.subr.mxu0 0.0
  %281 = vmatpush2.msra.mxu0 0.0
  %282 = vmatprep.subr.mxu0 0.0
  %283 = vmatpush2.msra.mxu0 0.0
  %284 = vmatprep.subr.mxu0 0.0
  %285 = vmatpush2.msra.mxu0 0.0
  %286 = vmatprep.subr.mxu0 0.0
  %287 = vmatpush2.msra.mxu0 0.0
  %288 = vmatprep.subr.mxu0 0.0
  %289 = vmatpush2.msra.mxu0 0.0
  %290 = vmatprep.subr.mxu0 0.0
  %291 = vmatpush2.msra.mxu0 0.0
  %292 = vmatprep.subr.mxu0 0.0
  %293 = vmatpush2.msra.mxu0 0.0
  %294 = vmatprep.subr.mxu0 0.0
  %295 = vmatpush2.msra.mxu0 0.0
  %296 = vmatprep.subr.mxu0 0.0
  %297 = vmatpush2.msra.mxu0 0.0
  %298 = vmatprep.subr.mxu0 0.0
  %299 = vmatpush2.msra.mxu0 0.0
  %300 = vmatprep.subr.mxu0 0.0
  %301 = vmatpush2.msra.mxu0 0.0
  %302 = vmatprep.subr.mxu0 0.0
  %303 = vmatpush2.msra.mxu0 0.0
  %304 = vmatprep.subr.mxu0 0.0
  %305 = vmatpush2.msra.mxu0 0.0
  %306 = vmatprep.subr.mxu0 0.0
  %307 = vmatpush2.msra.mxu0 0.0
  %308 = vmatprep.subr.mxu0 0.0
  %309 = vmatpush2.msra.mxu0 0.0
  %310 = vmatprep.subr.mxu0 0.0
  %311 = vmatpush2.msra.mxu0 0.0
  %312 = vmatprep.mubr.f32.mxu0 0.0
  %313 = vmatmul.mubr.f32.gmra.mxu0 %v132
  %v314 = vpop.f32.mrf.mxu0
  %v315 = vadd.f32 %v244, %v314
  %v316 = vpop.f32.mrf.mxu0
  %317 = vmatprep.mubr.f32.mxu0 0.0
  %318 = vmatmul.mubr.f32.gmra.mxu0 %v133
  %v319 = vpop.f32.mrf.mxu0
  %v320 = vadd.f32 %v245, %v319
  %v321 = vpop.f32.mrf.mxu0
  %322 = vmatprep.mubr.f32.mxu0 0.0
  %323 = vmatmul.mubr.f32.gmra.mxu0 %v134
  %v324 = vpop.f32.mrf.mxu0
  %v325 = vadd.f32 %v246, %v324
  %v326 = vpop.f32.mrf.mxu0
  %327 = vmatprep.mubr.f32.mxu0 0.0
  %328 = vmatmul.mubr.f32.gmra.mxu0 %v135
  %v329 = vpop.f32.mrf.mxu0
  %v330 = vadd.f32 %v247, %v329
  %v331 = vpop.f32.mrf.mxu0
  %332 = vdwg.mxu0
  %v333 = vld [vmem:[%s1 + $0x8] sm:$0xff]
  %v334 = vld [vmem:[%s1 + $0x50] sm:$0xff]
  %v335 = vld [vmem:[%s1 + $0x98] sm:$0xff]
  %v336 = vld [vmem:[%s1 + $0xe0] sm:$0xff]
  %353 = vrot.lane.b32.xlu0 %v136, 127
  %v354 = vpop.permute.xlu0 %353
  %355 = vrot.lane.b32.xlu0 %v137, 127
  %v356 = vpop.permute.xlu0 %355
  %357 = vrot.lane.b32.xlu0 %v138, 127
  %v358 = vpop.permute.xlu0 %357
  %359 = vrot.lane.b32.xlu0 %v139, 127
  %v360 = vpop.permute.xlu0 %359
  %361 = vrot.lane.b32.xlu0 %v140, 127
  %v362 = vpop.permute.xlu0 %361
  %363 = vrot.lane.b32.xlu0 %v141, 127
  %v364 = vpop.permute.xlu0 %363
  %365 = vrot.lane.b32.xlu0 %v142, 127
  %v366 = vpop.permute.xlu0 %365
  %367 = vrot.lane.b32.xlu0 %v143, 127
  %v368 = vpop.permute.xlu0 %367
  %369 = vrot.lane.b32.xlu0 %v144, 127
  %v370 = vpop.permute.xlu0 %369
  %371 = vrot.lane.b32.xlu0 %v145, 127
  %v372 = vpop.permute.xlu0 %371
  %373 = vrot.lane.b32.xlu0 %v146, 127
  %v374 = vpop.permute.xlu0 %373
  %375 = vrot.lane.b32.xlu0 %v147, 127
  %v376 = vpop.permute.xlu0 %375
  %377 = vrot.lane.b32.xlu0 %v148, 127
  %v378 = vpop.permute.xlu0 %377
  %379 = vrot.lane.b32.xlu0 %v149, 127
  %v380 = vpop.permute.xlu0 %379
  %381 = vrot.lane.b32.xlu0 %v150, 127
  %v382 = vpop.permute.xlu0 %381
  %383 = vrot.lane.b32.xlu0 %v151, 127
  %v384 = vpop.permute.xlu0 %383
  %401 = vmatprep.subr.mxu0 0.0
  %402 = vmatpush1.msra.mxu0 %v384
  %403 = vmatprep.subr.mxu0 0.0
  %404 = vmatpush1.msra.mxu0 %v382
  %405 = vmatprep.subr.mxu0 0.0
  %406 = vmatpush1.msra.mxu0 %v380
  %407 = vmatprep.subr.mxu0 0.0
  %408 = vmatpush1.msra.mxu0 %v378
  %409 = vmatprep.subr.mxu0 0.0
  %410 = vmatpush1.msra.mxu0 %v376
  %411 = vmatprep.subr.mxu0 0.0
  %412 = vmatpush1.msra.mxu0 %v374
  %413 = vmatprep.subr.mxu0 0.0
  %414 = vmatpush1.msra.mxu0 %v372
  %415 = vmatprep.subr.mxu0 0.0
  %416 = vmatpush1.msra.mxu0 %v370
  %417 = vmatprep.subr.mxu0 0.0
  %418 = vmatpush1.msra.mxu0 %v368
  %419 = vmatprep.subr.mxu0 0.0
  %420 = vmatpush1.msra.mxu0 %v366
  %421 = vmatprep.subr.mxu0 0.0
  %422 = vmatpush1.msra.mxu0 %v364
  %423 = vmatprep.subr.mxu0 0.0
  %424 = vmatpush1.msra.mxu0 %v362
  %425 = vmatprep.subr.mxu0 0.0
  %426 = vmatpush1.msra.mxu0 %v360
  %427 = vmatprep.subr.mxu0 0.0
  %428 = vmatpush1.msra.mxu0 %v358
  %429 = vmatprep.subr.mxu0 0.0
  %430 = vmatpush1.msra.mxu0 %v356
  %431 = vmatprep.subr.mxu0 0.0
  %432 = vmatpush1.msra.mxu0 %v354
  %433 = vmatprep.subr.mxu0 0.0
  %434 = vmatpush2.msra.mxu0 0.0
  %435 = vmatprep.subr.mxu0 0.0
  %436 = vmatpush2.msra.mxu0 0.0
  %437 = vmatprep.subr.mxu0 0.0
  %438 = vmatpush2.msra.mxu0 0.0
  %439 = vmatprep.subr.mxu0 0.0
  %440 = vmatpush2.msra.mxu0 0.0
  %441 = vmatprep.subr.mxu0 0.0
  %442 = vmatpush2.msra.mxu0 0.0
  %443 = vmatprep.subr.mxu0 0.0
  %444 = vmatpush2.msra.mxu0 0.0
  %445 = vmatprep.subr.mxu0 0.0
  %446 = vmatpush2.msra.mxu0 0.0
  %447 = vmatprep.subr.mxu0 0.0
  %448 = vmatpush2.msra.mxu0 0.0
  %449 = vmatprep.subr.mxu0 0.0
  %450 = vmatpush2.msra.mxu0 0.0
  %451 = vmatprep.subr.mxu0 0.0
  %452 = vmatpush2.msra.mxu0 0.0
  %453 = vmatprep.subr.mxu0 0.0
  %454 = vmatpush2.msra.mxu0 0.0
  %455 = vmatprep.subr.mxu0 0.0
  %456 = vmatpush2.msra.mxu0 0.0
  %457 = vmatprep.subr.mxu0 0.0
  %458 = vmatpush2.msra.mxu0 0.0
  %459 = vmatprep.subr.mxu0 0.0
  %460 = vmatpush2.msra.mxu0 0.0
  %461 = vmatprep.subr.mxu0 0.0
  %462 = vmatpush2.msra.mxu0 0.0
  %463 = vmatprep.subr.mxu0 0.0
  %464 = vmatpush2.msra.mxu0 0.0
  %465 = vmatprep.mubr.f32.mxu0 0.0
  %466 = vmatmul.mubr.f32.gmra.mxu0 %v333
  %v467 = vpop.f32.mrf.mxu0
  %v468 = vadd.f32 0.0, %v467
  %v469 = vpop.f32.mrf.mxu0
  %470 = vmatprep.mubr.f32.mxu0 0.0
  %471 = vmatmul.mubr.f32.gmra.mxu0 %v334
  %v472 = vpop.f32.mrf.mxu0
  %v473 = vadd.f32 0.0, %v472
  %v474 = vpop.f32.mrf.mxu0
  %475 = vmatprep.mubr.f32.mxu0 0.0
  %476 = vmatmul.mubr.f32.gmra.mxu0 %v335
  %v477 = vpop.f32.mrf.mxu0
  %v478 = vadd.f32 0.0, %v477
  %v479 = vpop.f32.mrf.mxu0
  %480 = vmatprep.mubr.f32.mxu0 0.0
  %481 = vmatmul.mubr.f32.gmra.mxu0 %v336
  %v482 = vpop.f32.mrf.mxu0
  %v483 = vadd.f32 0.0, %v482
  %v484 = vpop.f32.mrf.mxu0
  %485 = vdwg.mxu0
  %vm486 = vcmp.eq.s32.totalorder %v111, 1
  %v487 = vsel %vm486, %v468, 0.0
  %v488 = vsel %vm486, %v473, 0.0
  %v489 = vsel %vm486, %v478, 0.0
  %v490 = vsel %vm486, %v483, 0.0
  %v491 = vadd.f32 %v315, %v487
  %v492 = vadd.f32 %v320, %v488
  %v493 = vadd.f32 %v325, %v489
  %v494 = vadd.f32 %v330, %v490
  %v495 = vld [vmem:[%s1 + $0x10] sm:$0xff]
  %v496 = vld [vmem:[%s1 + $0x58] sm:$0xff]
  %v497 = vld [vmem:[%s1 + $0xa0] sm:$0xff]
  %v498 = vld [vmem:[%s1 + $0xe8] sm:$0xff]
  %499 = vrot.lane.b32.xlu0 %v136, 126
  %v500 = vpop.permute.xlu0 %499
  %501 = vrot.lane.b32.xlu0 %v137, 126
  %v502 = vpop.permute.xlu0 %501
  %503 = vrot.lane.b32.xlu0 %v138, 126
  %v504 = vpop.permute.xlu0 %503
  %505 = vrot.lane.b32.xlu0 %v139, 126
  %v506 = vpop.permute.xlu0 %505
  %507 = vrot.lane.b32.xlu0 %v140, 126
  %v508 = vpop.permute.xlu0 %507
  %509 = vrot.lane.b32.xlu0 %v141, 126
  %v510 = vpop.permute.xlu0 %509
  %511 = vrot.lane.b32.xlu0 %v142, 126
  %v512 = vpop.permute.xlu0 %511
  %513 = vrot.lane.b32.xlu0 %v143, 126
  %v514 = vpop.permute.xlu0 %513
  %515 = vrot.lane.b32.xlu0 %v144, 126
  %v516 = vpop.permute.xlu0 %515
  %517 = vrot.lane.b32.xlu0 %v145, 126
  %v518 = vpop.permute.xlu0 %517
  %519 = vrot.lane.b32.xlu0 %v146, 126
  %v520 = vpop.permute.xlu0 %519
  %521 = vrot.lane.b32.xlu0 %v147, 126
  %v522 = vpop.permute.xlu0 %521
  %523 = vrot.lane.b32.xlu0 %v148, 126
  %v524 = vpop.permute.xlu0 %523
  %525 = vrot.lane.b32.xlu0 %v149, 126
  %v526 = vpop.permute.xlu0 %525
  %527 = vrot.lane.b32.xlu0 %v150, 126
  %v528 = vpop.permute.xlu0 %527
  %529 = vrot.lane.b32.xlu0 %v151, 126
  %v530 = vpop.permute.xlu0 %529
  %547 = vmatprep.subr.mxu0 0.0
  %548 = vmatpush1.msra.mxu0 %v530
  %549 = vmatprep.subr.mxu0 0.0
  %550 = vmatpush1.msra.mxu0 %v528
  %551 = vmatprep.subr.mxu0 0.0
  %552 = vmatpush1.msra.mxu0 %v526
  %553 = vmatprep.subr.mxu0 0.0
  %554 = vmatpush1.msra.mxu0 %v524
  %555 = vmatprep.subr.mxu0 0.0
  %556 = vmatpush1.msra.mxu0 %v522
  %557 = vmatprep.subr.mxu0 0.0
  %558 = vmatpush1.msra.mxu0 %v520
  %559 = vmatprep.subr.mxu0 0.0
  %560 = vmatpush1.msra.mxu0 %v518
  %561 = vmatprep.subr.mxu0 0.0
  %562 = vmatpush1.msra.mxu0 %v516
  %563 = vmatprep.subr.mxu0 0.0
  %564 = vmatpush1.msra.mxu0 %v514
  %565 = vmatprep.subr.mxu0 0.0
  %566 = vmatpush1.msra.mxu0 %v512
  %567 = vmatprep.subr.mxu0 0.0
  %568 = vmatpush1.msra.mxu0 %v510
  %569 = vmatprep.subr.mxu0 0.0
  %570 = vmatpush1.msra.mxu0 %v508
  %571 = vmatprep.subr.mxu0 0.0
  %572 = vmatpush1.msra.mxu0 %v506
  %573 = vmatprep.subr.mxu0 0.0
  %574 = vmatpush1.msra.mxu0 %v504
  %575 = vmatprep.subr.mxu0 0.0
  %576 = vmatpush1.msra.mxu0 %v502
  %577 = vmatprep.subr.mxu0 0.0
  %578 = vmatpush1.msra.mxu0 %v500
  %579 = vmatprep.subr.mxu0 0.0
  %580 = vmatpush2.msra.mxu0 0.0
  %581 = vmatprep.subr.mxu0 0.0
  %582 = vmatpush2.msra.mxu0 0.0
  %583 = vmatprep.subr.mxu0 0.0
  %584 = vmatpush2.msra.mxu0 0.0
  %585 = vmatprep.subr.mxu0 0.0
  %586 = vmatpush2.msra.mxu0 0.0
  %587 = vmatprep.subr.mxu0 0.0
  %588 = vmatpush2.msra.mxu0 0.0
  %589 = vmatprep.subr.mxu0 0.0
  %590 = vmatpush2.msra.mxu0 0.0
  %591 = vmatprep.subr.mxu0 0.0
  %592 = vmatpush2.msra.mxu0 0.0
  %593 = vmatprep.subr.mxu0 0.0
  %594 = vmatpush2.msra.mxu0 0.0
  %595 = vmatprep.subr.mxu0 0.0
  %596 = vmatpush2.msra.mxu0 0.0
  %597 = vmatprep.subr.mxu0 0.0
  %598 = vmatpush2.msra.mxu0 0.0
  %599 = vmatprep.subr.mxu0 0.0
  %600 = vmatpush2.msra.mxu0 0.0
  %601 = vmatprep.subr.mxu0 0.0
  %602 = vmatpush2.msra.mxu0 0.0
  %603 = vmatprep.subr.mxu0 0.0
  %604 = vmatpush2.msra.mxu0 0.0
  %605 = vmatprep.subr.mxu0 0.0
  %606 = vmatpush2.msra.mxu0 0.0
  %607 = vmatprep.subr.mxu0 0.0
  %608 = vmatpush2.msra.mxu0 0.0
  %609 = vmatprep.subr.mxu0 0.0
  %610 = vmatpush2.msra.mxu0 0.0
  %611 = vmatprep.mubr.f32.mxu0 0.0
  %612 = vmatmul.mubr.f32.gmra.mxu0 %v495
  %v613 = vpop.f32.mrf.mxu0
  %v614 = vadd.f32 0.0, %v613
  %v615 = vpop.f32.mrf.mxu0
  %616 = vmatprep.mubr.f32.mxu0 0.0
  %617 = vmatmul.mubr.f32.gmra.mxu0 %v496
  %v618 = vpop.f32.mrf.mxu0
  %v619 = vadd.f32 0.0, %v618
  %v620 = vpop.f32.mrf.mxu0
  %621 = vmatprep.mubr.f32.mxu0 0.0
  %622 = vmatmul.mubr.f32.gmra.mxu0 %v497
  %v623 = vpop.f32.mrf.mxu0
  %v624 = vadd.f32 0.0, %v623
  %v625 = vpop.f32.mrf.mxu0
  %626 = vmatprep.mubr.f32.mxu0 0.0
  %627 = vmatmul.mubr.f32.gmra.mxu0 %v498
  %v628 = vpop.f32.mrf.mxu0
  %v629 = vadd.f32 0.0, %v628
  %v630 = vpop.f32.mrf.mxu0
  %631 = vdwg.mxu0
  %vm632 = vmand %vm110, %vm131
  %v633 = vsel %vm632, 1, 0
  %vm634 = vcmp.eq.s32.totalorder %v633, 1
  %v635 = vsel %vm634, %v614, 0.0
  %v636 = vsel %vm634, %v619, 0.0
  %v637 = vsel %vm634, %v624, 0.0
  %v638 = vsel %vm634, %v629, 0.0
  %v639 = vadd.f32 %v491, %v635
  %v640 = vadd.f32 %v492, %v636
  %v641 = vadd.f32 %v493, %v637
  %v642 = vadd.f32 %v494, %v638
  %v643 = vld [vmem:[%s1 + $0x18] sm:$0xff]
  %v644 = vld [vmem:[%s1 + $0x60] sm:$0xff]
  %v645 = vld [vmem:[%s1 + $0xa8] sm:$0xff]
  %v646 = vld [vmem:[%s1 + $0xf0] sm:$0xff]
  %647 = vrot.lane.b32.xlu0 %v136, 121
  %v648 = vpop.permute.xlu0 %647
  %649 = vrot.lane.b32.xlu0 %v137, 121
  %v650 = vpop.permute.xlu0 %649
  %651 = vrot.lane.b32.xlu0 %v138, 121
  %v652 = vpop.permute.xlu0 %651
  %653 = vrot.lane.b32.xlu0 %v139, 121
  %v654 = vpop.permute.xlu0 %653
  %655 = vrot.lane.b32.xlu0 %v140, 121
  %v656 = vpop.permute.xlu0 %655
  %657 = vrot.lane.b32.xlu0 %v141, 121
  %v658 = vpop.permute.xlu0 %657
  %659 = vrot.lane.b32.xlu0 %v142, 121
  %v660 = vpop.permute.xlu0 %659
  %661 = vrot.lane.b32.xlu0 %v143, 121
  %v662 = vpop.permute.xlu0 %661
  %663 = vrot.lane.b32.xlu0 %v144, 121
  %v664 = vpop.permute.xlu0 %663
  %665 = vrot.lane.b32.xlu0 %v145, 121
  %v666 = vpop.permute.xlu0 %665
  %667 = vrot.lane.b32.xlu0 %v146, 121
  %v668 = vpop.permute.xlu0 %667
  %669 = vrot.lane.b32.xlu0 %v147, 121
  %v670 = vpop.permute.xlu0 %669
  %671 = vrot.lane.b32.xlu0 %v148, 121
  %v672 = vpop.permute.xlu0 %671
  %673 = vrot.lane.b32.xlu0 %v149, 121
  %v674 = vpop.permute.xlu0 %673
  %675 = vrot.lane.b32.xlu0 %v150, 121
  %v676 = vpop.permute.xlu0 %675
  %677 = vrot.lane.b32.xlu0 %v151, 121
  %v678 = vpop.permute.xlu0 %677
  %695 = vmatprep.subr.mxu0 0.0
  %696 = vmatpush1.msra.mxu0 %v678
  %697 = vmatprep.subr.mxu0 0.0
  %698 = vmatpush1.msra.mxu0 %v676
  %699 = vmatprep.subr.mxu0 0.0
  %700 = vmatpush1.msra.mxu0 %v674
  %701 = vmatprep.subr.mxu0 0.0
  %702 = vmatpush1.msra.mxu0 %v672
  %703 = vmatprep.subr.mxu0 0.0
  %704 = vmatpush1.msra.mxu0 %v670
  %705 = vmatprep.subr.mxu0 0.0
  %706 = vmatpush1.msra.mxu0 %v668
  %707 = vmatprep.subr.mxu0 0.0
  %708 = vmatpush1.msra.mxu0 %v666
  %709 = vmatprep.subr.mxu0 0.0
  %710 = vmatpush1.msra.mxu0 %v664
  %711 = vmatprep.subr.mxu0 0.0
  %712 = vmatpush1.msra.mxu0 %v662
  %713 = vmatprep.subr.mxu0 0.0
  %714 = vmatpush1.msra.mxu0 %v660
  %715 = vmatprep.subr.mxu0 0.0
  %716 = vmatpush1.msra.mxu0 %v658
  %717 = vmatprep.subr.mxu0 0.0
  %718 = vmatpush1.msra.mxu0 %v656
  %719 = vmatprep.subr.mxu0 0.0
  %720 = vmatpush1.msra.mxu0 %v654
  %721 = vmatprep.subr.mxu0 0.0
  %722 = vmatpush1.msra.mxu0 %v652
  %723 = vmatprep.subr.mxu0 0.0
  %724 = vmatpush1.msra.mxu0 %v650
  %725 = vmatprep.subr.mxu0 0.0
  %726 = vmatpush1.msra.mxu0 %v648
  %727 = vmatprep.subr.mxu0 0.0
  %728 = vmatpush2.msra.mxu0 0.0
  %729 = vmatprep.subr.mxu0 0.0
  %730 = vmatpush2.msra.mxu0 0.0
  %731 = vmatprep.subr.mxu0 0.0
  %732 = vmatpush2.msra.mxu0 0.0
  %733 = vmatprep.subr.mxu0 0.0
  %734 = vmatpush2.msra.mxu0 0.0
  %735 = vmatprep.subr.mxu0 0.0
  %736 = vmatpush2.msra.mxu0 0.0
  %737 = vmatprep.subr.mxu0 0.0
  %738 = vmatpush2.msra.mxu0 0.0
  %739 = vmatprep.subr.mxu0 0.0
  %740 = vmatpush2.msra.mxu0 0.0
  %741 = vmatprep.subr.mxu0 0.0
  %742 = vmatpush2.msra.mxu0 0.0
  %743 = vmatprep.subr.mxu0 0.0
  %744 = vmatpush2.msra.mxu0 0.0
  %745 = vmatprep.subr.mxu0 0.0
  %746 = vmatpush2.msra.mxu0 0.0
  %747 = vmatprep.subr.mxu0 0.0
  %748 = vmatpush2.msra.mxu0 0.0
  %749 = vmatprep.subr.mxu0 0.0
  %750 = vmatpush2.msra.mxu0 0.0
  %751 = vmatprep.subr.mxu0 0.0
  %752 = vmatpush2.msra.mxu0 0.0
  %753 = vmatprep.subr.mxu0 0.0
  %754 = vmatpush2.msra.mxu0 0.0
  %755 = vmatprep.subr.mxu0 0.0
  %756 = vmatpush2.msra.mxu0 0.0
  %757 = vmatprep.subr.mxu0 0.0
  %758 = vmatpush2.msra.mxu0 0.0
  %759 = vmatprep.mubr.f32.mxu0 0.0
  %760 = vmatmul.mubr.f32.gmra.mxu0 %v643
  %v761 = vpop.f32.mrf.mxu0
  %v762 = vadd.f32 0.0, %v761
  %v763 = vpop.f32.mrf.mxu0
  %764 = vmatprep.mubr.f32.mxu0 0.0
  %765 = vmatmul.mubr.f32.gmra.mxu0 %v644
  %v766 = vpop.f32.mrf.mxu0
  %v767 = vadd.f32 0.0, %v766
  %v768 = vpop.f32.mrf.mxu0
  %769 = vmatprep.mubr.f32.mxu0 0.0
  %770 = vmatmul.mubr.f32.gmra.mxu0 %v645
  %v771 = vpop.f32.mrf.mxu0
  %v772 = vadd.f32 0.0, %v771
  %v773 = vpop.f32.mrf.mxu0
  %774 = vmatprep.mubr.f32.mxu0 0.0
  %775 = vmatmul.mubr.f32.gmra.mxu0 %v646
  %v776 = vpop.f32.mrf.mxu0
  %v777 = vadd.f32 0.0, %v776
  %v778 = vpop.f32.mrf.mxu0
  %779 = vdwg.mxu0
  %v780 = vsel %vm130, 1, 0
  %vm781 = vcmp.eq.s32.totalorder %v780, 1
  %v782 = vsel %vm781, %v762, 0.0
  %v783 = vsel %vm781, %v767, 0.0
  %v784 = vsel %vm781, %v772, 0.0
  %v785 = vsel %vm781, %v777, 0.0
  %v786 = vadd.f32 %v639, %v782
  %v787 = vadd.f32 %v640, %v783
  %v788 = vadd.f32 %v641, %v784
  %v789 = vadd.f32 %v642, %v785
  %v790 = vld [vmem:[%s1 + $0x28] sm:$0xff]
  %v791 = vld [vmem:[%s1 + $0x70] sm:$0xff]
  %v792 = vld [vmem:[%s1 + $0xb8] sm:$0xff]
  %v793 = vld [vmem:[%s1 + $0x100] sm:$0xff]
  %794 = vrot.lane.b32.xlu0 %v136, 119
  %v795 = vpop.permute.xlu0 %794
  %796 = vrot.lane.b32.xlu0 %v137, 119
  %v797 = vpop.permute.xlu0 %796
  %798 = vrot.lane.b32.xlu0 %v138, 119
  %v799 = vpop.permute.xlu0 %798
  %800 = vrot.lane.b32.xlu0 %v139, 119
  %v801 = vpop.permute.xlu0 %800
  %802 = vrot.lane.b32.xlu0 %v140, 119
  %v803 = vpop.permute.xlu0 %802
  %804 = vrot.lane.b32.xlu0 %v141, 119
  %v805 = vpop.permute.xlu0 %804
  %806 = vrot.lane.b32.xlu0 %v142, 119
  %v807 = vpop.permute.xlu0 %806
  %808 = vrot.lane.b32.xlu0 %v143, 119
  %v809 = vpop.permute.xlu0 %808
  %810 = vrot.lane.b32.xlu0 %v144, 119
  %v811 = vpop.permute.xlu0 %810
  %812 = vrot.lane.b32.xlu0 %v145, 119
  %v813 = vpop.permute.xlu0 %812
  %814 = vrot.lane.b32.xlu0 %v146, 119
  %v815 = vpop.permute.xlu0 %814
  %816 = vrot.lane.b32.xlu0 %v147, 119
  %v817 = vpop.permute.xlu0 %816
  %818 = vrot.lane.b32.xlu0 %v148, 119
  %v819 = vpop.permute.xlu0 %818
  %820 = vrot.lane.b32.xlu0 %v149, 119
  %v821 = vpop.permute.xlu0 %820
  %822 = vrot.lane.b32.xlu0 %v150, 119
  %v823 = vpop.permute.xlu0 %822
  %824 = vrot.lane.b32.xlu0 %v151, 119
  %v825 = vpop.permute.xlu0 %824
  %842 = vmatprep.subr.mxu0 0.0
  %843 = vmatpush1.msra.mxu0 %v825
  %844 = vmatprep.subr.mxu0 0.0
  %845 = vmatpush1.msra.mxu0 %v823
  %846 = vmatprep.subr.mxu0 0.0
  %847 = vmatpush1.msra.mxu0 %v821
  %848 = vmatprep.subr.mxu0 0.0
  %849 = vmatpush1.msra.mxu0 %v819
  %850 = vmatprep.subr.mxu0 0.0
  %851 = vmatpush1.msra.mxu0 %v817
  %852 = vmatprep.subr.mxu0 0.0
  %853 = vmatpush1.msra.mxu0 %v815
  %854 = vmatprep.subr.mxu0 0.0
  %855 = vmatpush1.msra.mxu0 %v813
  %856 = vmatprep.subr.mxu0 0.0
  %857 = vmatpush1.msra.mxu0 %v811
  %858 = vmatprep.subr.mxu0 0.0
  %859 = vmatpush1.msra.mxu0 %v809
  %860 = vmatprep.subr.mxu0 0.0
  %861 = vmatpush1.msra.mxu0 %v807
  %862 = vmatprep.subr.mxu0 0.0
  %863 = vmatpush1.msra.mxu0 %v805
  %864 = vmatprep.subr.mxu0 0.0
  %865 = vmatpush1.msra.mxu0 %v803
  %866 = vmatprep.subr.mxu0 0.0
  %867 = vmatpush1.msra.mxu0 %v801
  %868 = vmatprep.subr.mxu0 0.0
  %869 = vmatpush1.msra.mxu0 %v799
  %870 = vmatprep.subr.mxu0 0.0
  %871 = vmatpush1.msra.mxu0 %v797
  %872 = vmatprep.subr.mxu0 0.0
  %873 = vmatpush1.msra.mxu0 %v795
  %874 = vmatprep.subr.mxu0 0.0
  %875 = vmatpush2.msra.mxu0 0.0
  %876 = vmatprep.subr.mxu0 0.0
  %877 = vmatpush2.msra.mxu0 0.0
  %878 = vmatprep.subr.mxu0 0.0
  %879 = vmatpush2.msra.mxu0 0.0
  %880 = vmatprep.subr.mxu0 0.0
  %881 = vmatpush2.msra.mxu0 0.0
  %882 = vmatprep.subr.mxu0 0.0
  %883 = vmatpush2.msra.mxu0 0.0
  %884 = vmatprep.subr.mxu0 0.0
  %885 = vmatpush2.msra.mxu0 0.0
  %886 = vmatprep.subr.mxu0 0.0
  %887 = vmatpush2.msra.mxu0 0.0
  %888 = vmatprep.subr.mxu0 0.0
  %889 = vmatpush2.msra.mxu0 0.0
  %890 = vmatprep.subr.mxu0 0.0
  %891 = vmatpush2.msra.mxu0 0.0
  %892 = vmatprep.subr.mxu0 0.0
  %893 = vmatpush2.msra.mxu0 0.0
  %894 = vmatprep.subr.mxu0 0.0
  %895 = vmatpush2.msra.mxu0 0.0
  %896 = vmatprep.subr.mxu0 0.0
  %897 = vmatpush2.msra.mxu0 0.0
  %898 = vmatprep.subr.mxu0 0.0
  %899 = vmatpush2.msra.mxu0 0.0
  %900 = vmatprep.subr.mxu0 0.0
  %901 = vmatpush2.msra.mxu0 0.0
  %902 = vmatprep.subr.mxu0 0.0
  %903 = vmatpush2.msra.mxu0 0.0
  %904 = vmatprep.subr.mxu0 0.0
  %905 = vmatpush2.msra.mxu0 0.0
  %906 = vmatprep.mubr.f32.mxu0 0.0
  %907 = vmatmul.mubr.f32.gmra.mxu0 %v790
  %v908 = vpop.f32.mrf.mxu0
  %v909 = vadd.f32 0.0, %v908
  %v910 = vpop.f32.mrf.mxu0
  %911 = vmatprep.mubr.f32.mxu0 0.0
  %912 = vmatmul.mubr.f32.gmra.mxu0 %v791
  %v913 = vpop.f32.mrf.mxu0
  %v914 = vadd.f32 0.0, %v913
  %v915 = vpop.f32.mrf.mxu0
  %916 = vmatprep.mubr.f32.mxu0 0.0
  %917 = vmatmul.mubr.f32.gmra.mxu0 %v792
  %v918 = vpop.f32.mrf.mxu0
  %v919 = vadd.f32 0.0, %v918
  %v920 = vpop.f32.mrf.mxu0
  %921 = vmatprep.mubr.f32.mxu0 0.0
  %922 = vmatmul.mubr.f32.gmra.mxu0 %v793
  %v923 = vpop.f32.mrf.mxu0
  %v924 = vadd.f32 0.0, %v923
  %v925 = vpop.f32.mrf.mxu0
  %926 = vdwg.mxu0
  %v927 = vsel %vm131, 1, 0
  %vm928 = vcmp.eq.s32.totalorder %v927, 1
  %v929 = vsel %vm928, %v909, 0.0
  %v930 = vsel %vm928, %v914, 0.0
  %v931 = vsel %vm928, %v919, 0.0
  %v932 = vsel %vm928, %v924, 0.0
  %v933 = vadd.f32 %v786, %v929
  %v934 = vadd.f32 %v787, %v930
  %v935 = vadd.f32 %v788, %v931
  %v936 = vadd.f32 %v789, %v932
  %v937 = vld [vmem:[%s1 + $0x30] sm:$0xff]
  %v938 = vld [vmem:[%s1 + $0x78] sm:$0xff]
  %v939 = vld [vmem:[%s1 + $0xc0] sm:$0xff]
  %v940 = vld [vmem:[%s1 + $0x108] sm:$0xff]
  %941 = vrot.lane.b32.xlu0 %v136, 114
  %v942 = vpop.permute.xlu0 %941
  %943 = vrot.lane.b32.xlu0 %v137, 114
  %v944 = vpop.permute.xlu0 %943
  %945 = vrot.lane.b32.xlu0 %v138, 114
  %v946 = vpop.permute.xlu0 %945
  %947 = vrot.lane.b32.xlu0 %v139, 114
  %v948 = vpop.permute.xlu0 %947
  %949 = vrot.lane.b32.xlu0 %v140, 114
  %v950 = vpop.permute.xlu0 %949
  %951 = vrot.lane.b32.xlu0 %v141, 114
  %v952 = vpop.permute.xlu0 %951
  %953 = vrot.lane.b32.xlu0 %v142, 114
  %v954 = vpop.permute.xlu0 %953
  %955 = vrot.lane.b32.xlu0 %v143, 114
  %v956 = vpop.permute.xlu0 %955
  %957 = vrot.lane.b32.xlu0 %v144, 114
  %v958 = vpop.permute.xlu0 %957
  %959 = vrot.lane.b32.xlu0 %v145, 114
  %v960 = vpop.permute.xlu0 %959
  %961 = vrot.lane.b32.xlu0 %v146, 114
  %v962 = vpop.permute.xlu0 %961
  %963 = vrot.lane.b32.xlu0 %v147, 114
  %v964 = vpop.permute.xlu0 %963
  %965 = vrot.lane.b32.xlu0 %v148, 114
  %v966 = vpop.permute.xlu0 %965
  %967 = vrot.lane.b32.xlu0 %v149, 114
  %v968 = vpop.permute.xlu0 %967
  %969 = vrot.lane.b32.xlu0 %v150, 114
  %v970 = vpop.permute.xlu0 %969
  %971 = vrot.lane.b32.xlu0 %v151, 114
  %v972 = vpop.permute.xlu0 %971
  %989 = vmatprep.subr.mxu0 0.0
  %990 = vmatpush1.msra.mxu0 %v972
  %991 = vmatprep.subr.mxu0 0.0
  %992 = vmatpush1.msra.mxu0 %v970
  %993 = vmatprep.subr.mxu0 0.0
  %994 = vmatpush1.msra.mxu0 %v968
  %995 = vmatprep.subr.mxu0 0.0
  %996 = vmatpush1.msra.mxu0 %v966
  %997 = vmatprep.subr.mxu0 0.0
  %998 = vmatpush1.msra.mxu0 %v964
  %999 = vmatprep.subr.mxu0 0.0
  %1000 = vmatpush1.msra.mxu0 %v962
  %1001 = vmatprep.subr.mxu0 0.0
  %1002 = vmatpush1.msra.mxu0 %v960
  %1003 = vmatprep.subr.mxu0 0.0
  %1004 = vmatpush1.msra.mxu0 %v958
  %1005 = vmatprep.subr.mxu0 0.0
  %1006 = vmatpush1.msra.mxu0 %v956
  %1007 = vmatprep.subr.mxu0 0.0
  %1008 = vmatpush1.msra.mxu0 %v954
  %1009 = vmatprep.subr.mxu0 0.0
  %1010 = vmatpush1.msra.mxu0 %v952
  %1011 = vmatprep.subr.mxu0 0.0
  %1012 = vmatpush1.msra.mxu0 %v950
  %1013 = vmatprep.subr.mxu0 0.0
  %1014 = vmatpush1.msra.mxu0 %v948
  %1015 = vmatprep.subr.mxu0 0.0
  %1016 = vmatpush1.msra.mxu0 %v946
  %1017 = vmatprep.subr.mxu0 0.0
  %1018 = vmatpush1.msra.mxu0 %v944
  %1019 = vmatprep.subr.mxu0 0.0
  %1020 = vmatpush1.msra.mxu0 %v942
  %1021 = vmatprep.subr.mxu0 0.0
  %1022 = vmatpush2.msra.mxu0 0.0
  %1023 = vmatprep.subr.mxu0 0.0
  %1024 = vmatpush2.msra.mxu0 0.0
  %1025 = vmatprep.subr.mxu0 0.0
  %1026 = vmatpush2.msra.mxu0 0.0
  %1027 = vmatprep.subr.mxu0 0.0
  %1028 = vmatpush2.msra.mxu0 0.0
  %1029 = vmatprep.subr.mxu0 0.0
  %1030 = vmatpush2.msra.mxu0 0.0
  %1031 = vmatprep.subr.mxu0 0.0
  %1032 = vmatpush2.msra.mxu0 0.0
  %1033 = vmatprep.subr.mxu0 0.0
  %1034 = vmatpush2.msra.mxu0 0.0
  %1035 = vmatprep.subr.mxu0 0.0
  %1036 = vmatpush2.msra.mxu0 0.0
  %1037 = vmatprep.subr.mxu0 0.0
  %1038 = vmatpush2.msra.mxu0 0.0
  %1039 = vmatprep.subr.mxu0 0.0
  %1040 = vmatpush2.msra.mxu0 0.0
  %1041 = vmatprep.subr.mxu0 0.0
  %1042 = vmatpush2.msra.mxu0 0.0
  %1043 = vmatprep.subr.mxu0 0.0
  %1044 = vmatpush2.msra.mxu0 0.0
  %1045 = vmatprep.subr.mxu0 0.0
  %1046 = vmatpush2.msra.mxu0 0.0
  %1047 = vmatprep.subr.mxu0 0.0
  %1048 = vmatpush2.msra.mxu0 0.0
  %1049 = vmatprep.subr.mxu0 0.0
  %1050 = vmatpush2.msra.mxu0 0.0
  %1051 = vmatprep.subr.mxu0 0.0
  %1052 = vmatpush2.msra.mxu0 0.0
  %1053 = vmatprep.mubr.f32.mxu0 0.0
  %1054 = vmatmul.mubr.f32.gmra.mxu0 %v937
  %v1055 = vpop.f32.mrf.mxu0
  %v1056 = vadd.f32 0.0, %v1055
  %v1057 = vpop.f32.mrf.mxu0
  %1058 = vmatprep.mubr.f32.mxu0 0.0
  %1059 = vmatmul.mubr.f32.gmra.mxu0 %v938
  %v1060 = vpop.f32.mrf.mxu0
  %v1061 = vadd.f32 0.0, %v1060
  %v1062 = vpop.f32.mrf.mxu0
  %1063 = vmatprep.mubr.f32.mxu0 0.0
  %1064 = vmatmul.mubr.f32.gmra.mxu0 %v939
  %v1065 = vpop.f32.mrf.mxu0
  %v1066 = vadd.f32 0.0, %v1065
  %v1067 = vpop.f32.mrf.mxu0
  %1068 = vmatprep.mubr.f32.mxu0 0.0
  %1069 = vmatmul.mubr.f32.gmra.mxu0 %v940
  %v1070 = vpop.f32.mrf.mxu0
  %v1071 = vadd.f32 0.0, %v1070
  %v1072 = vpop.f32.mrf.mxu0
  %1073 = vdwg.mxu0
  %vm1074 = vmand %vm129, %vm130
  %v1075 = vsel %vm1074, 1, 0
  %vm1076 = vcmp.eq.s32.totalorder %v1075, 1
  %v1077 = vsel %vm1076, %v1056, 0.0
  %v1078 = vsel %vm1076, %v1061, 0.0
  %v1079 = vsel %vm1076, %v1066, 0.0
  %v1080 = vsel %vm1076, %v1071, 0.0
  %v1081 = vadd.f32 %v933, %v1077
  %v1082 = vadd.f32 %v934, %v1078
  %v1083 = vadd.f32 %v935, %v1079
  %v1084 = vadd.f32 %v936, %v1080
  %v1085 = vld [vmem:[%s1 + $0x38] sm:$0xff]
  %v1086 = vld [vmem:[%s1 + $0x80] sm:$0xff]
  %v1087 = vld [vmem:[%s1 + $0xc8] sm:$0xff]
  %v1088 = vld [vmem:[%s1 + $0x110] sm:$0xff]
  %1089 = vrot.lane.b32.xlu0 %v136, 113
  %v1090 = vpop.permute.xlu0 %1089
  %1091 = vrot.lane.b32.xlu0 %v137, 113
  %v1092 = vpop.permute.xlu0 %1091
  %1093 = vrot.lane.b32.xlu0 %v138, 113
  %v1094 = vpop.permute.xlu0 %1093
  %1095 = vrot.lane.b32.xlu0 %v139, 113
  %v1096 = vpop.permute.xlu0 %1095
  %1097 = vrot.lane.b32.xlu0 %v140, 113
  %v1098 = vpop.permute.xlu0 %1097
  %1099 = vrot.lane.b32.xlu0 %v141, 113
  %v1100 = vpop.permute.xlu0 %1099
  %1101 = vrot.lane.b32.xlu0 %v142, 113
  %v1102 = vpop.permute.xlu0 %1101
  %1103 = vrot.lane.b32.xlu0 %v143, 113
  %v1104 = vpop.permute.xlu0 %1103
  %1105 = vrot.lane.b32.xlu0 %v144, 113
  %v1106 = vpop.permute.xlu0 %1105
  %1107 = vrot.lane.b32.xlu0 %v145, 113
  %v1108 = vpop.permute.xlu0 %1107
  %1109 = vrot.lane.b32.xlu0 %v146, 113
  %v1110 = vpop.permute.xlu0 %1109
  %1111 = vrot.lane.b32.xlu0 %v147, 113
  %v1112 = vpop.permute.xlu0 %1111
  %1113 = vrot.lane.b32.xlu0 %v148, 113
  %v1114 = vpop.permute.xlu0 %1113
  %1115 = vrot.lane.b32.xlu0 %v149, 113
  %v1116 = vpop.permute.xlu0 %1115
  %1117 = vrot.lane.b32.xlu0 %v150, 113
  %v1118 = vpop.permute.xlu0 %1117
  %1119 = vrot.lane.b32.xlu0 %v151, 113
  %v1120 = vpop.permute.xlu0 %1119
  %1137 = vmatprep.subr.mxu0 0.0
  %1138 = vmatpush1.msra.mxu0 %v1120
  %1139 = vmatprep.subr.mxu0 0.0
  %1140 = vmatpush1.msra.mxu0 %v1118
  %1141 = vmatprep.subr.mxu0 0.0
  %1142 = vmatpush1.msra.mxu0 %v1116
  %1143 = vmatprep.subr.mxu0 0.0
  %1144 = vmatpush1.msra.mxu0 %v1114
  %1145 = vmatprep.subr.mxu0 0.0
  %1146 = vmatpush1.msra.mxu0 %v1112
  %1147 = vmatprep.subr.mxu0 0.0
  %1148 = vmatpush1.msra.mxu0 %v1110
  %1149 = vmatprep.subr.mxu0 0.0
  %1150 = vmatpush1.msra.mxu0 %v1108
  %1151 = vmatprep.subr.mxu0 0.0
  %1152 = vmatpush1.msra.mxu0 %v1106
  %1153 = vmatprep.subr.mxu0 0.0
  %1154 = vmatpush1.msra.mxu0 %v1104
  %1155 = vmatprep.subr.mxu0 0.0
  %1156 = vmatpush1.msra.mxu0 %v1102
  %1157 = vmatprep.subr.mxu0 0.0
  %1158 = vmatpush1.msra.mxu0 %v1100
  %1159 = vmatprep.subr.mxu0 0.0
  %1160 = vmatpush1.msra.mxu0 %v1098
  %1161 = vmatprep.subr.mxu0 0.0
  %1162 = vmatpush1.msra.mxu0 %v1096
  %1163 = vmatprep.subr.mxu0 0.0
  %1164 = vmatpush1.msra.mxu0 %v1094
  %1165 = vmatprep.subr.mxu0 0.0
  %1166 = vmatpush1.msra.mxu0 %v1092
  %1167 = vmatprep.subr.mxu0 0.0
  %1168 = vmatpush1.msra.mxu0 %v1090
  %1169 = vmatprep.subr.mxu0 0.0
  %1170 = vmatpush2.msra.mxu0 0.0
  %1171 = vmatprep.subr.mxu0 0.0
  %1172 = vmatpush2.msra.mxu0 0.0
  %1173 = vmatprep.subr.mxu0 0.0
  %1174 = vmatpush2.msra.mxu0 0.0
  %1175 = vmatprep.subr.mxu0 0.0
  %1176 = vmatpush2.msra.mxu0 0.0
  %1177 = vmatprep.subr.mxu0 0.0
  %1178 = vmatpush2.msra.mxu0 0.0
  %1179 = vmatprep.subr.mxu0 0.0
  %1180 = vmatpush2.msra.mxu0 0.0
  %1181 = vmatprep.subr.mxu0 0.0
  %1182 = vmatpush2.msra.mxu0 0.0
  %1183 = vmatprep.subr.mxu0 0.0
  %1184 = vmatpush2.msra.mxu0 0.0
  %1185 = vmatprep.subr.mxu0 0.0
  %1186 = vmatpush2.msra.mxu0 0.0
  %1187 = vmatprep.subr.mxu0 0.0
  %1188 = vmatpush2.msra.mxu0 0.0
  %1189 = vmatprep.subr.mxu0 0.0
  %1190 = vmatpush2.msra.mxu0 0.0
  %1191 = vmatprep.subr.mxu0 0.0
  %1192 = vmatpush2.msra.mxu0 0.0
  %1193 = vmatprep.subr.mxu0 0.0
  %1194 = vmatpush2.msra.mxu0 0.0
  %1195 = vmatprep.subr.mxu0 0.0
  %1196 = vmatpush2.msra.mxu0 0.0
  %1197 = vmatprep.subr.mxu0 0.0
  %1198 = vmatpush2.msra.mxu0 0.0
  %1199 = vmatprep.subr.mxu0 0.0
  %1200 = vmatpush2.msra.mxu0 0.0
  %1201 = vmatprep.mubr.f32.mxu0 0.0
  %1202 = vmatmul.mubr.f32.gmra.mxu0 %v1085
  %v1203 = vpop.f32.mrf.mxu0
  %v1204 = vadd.f32 0.0, %v1203
  %v1205 = vpop.f32.mrf.mxu0
  %1206 = vmatprep.mubr.f32.mxu0 0.0
  %1207 = vmatmul.mubr.f32.gmra.mxu0 %v1086
  %v1208 = vpop.f32.mrf.mxu0
  %v1209 = vadd.f32 0.0, %v1208
  %v1210 = vpop.f32.mrf.mxu0
  %1211 = vmatprep.mubr.f32.mxu0 0.0
  %1212 = vmatmul.mubr.f32.gmra.mxu0 %v1087
  %v1213 = vpop.f32.mrf.mxu0
  %v1214 = vadd.f32 0.0, %v1213
  %v1215 = vpop.f32.mrf.mxu0
  %1216 = vmatprep.mubr.f32.mxu0 0.0
  %1217 = vmatmul.mubr.f32.gmra.mxu0 %v1088
  %v1218 = vpop.f32.mrf.mxu0
  %v1219 = vadd.f32 0.0, %v1218
  %v1220 = vpop.f32.mrf.mxu0
  %1221 = vdwg.mxu0
  %v1222 = vsel %vm129, 1, 0
  %vm1223 = vcmp.eq.s32.totalorder %v1222, 1
  %v1224 = vsel %vm1223, %v1204, 0.0
  %v1225 = vsel %vm1223, %v1209, 0.0
  %v1226 = vsel %vm1223, %v1214, 0.0
  %v1227 = vsel %vm1223, %v1219, 0.0
  %v1228 = vadd.f32 %v1081, %v1224
  %v1229 = vadd.f32 %v1082, %v1225
  %v1230 = vadd.f32 %v1083, %v1226
  %v1231 = vadd.f32 %v1084, %v1227
  %v1232 = vld [vmem:[%s1 + $0x40] sm:$0xff]
  %v1233 = vld [vmem:[%s1 + $0x88] sm:$0xff]
  %v1234 = vld [vmem:[%s1 + $0xd0] sm:$0xff]
  %v1235 = vld [vmem:[%s1 + $0x118] sm:$0xff]
  %1236 = vrot.lane.b32.xlu0 %v136, 112
  %v1237 = vpop.permute.xlu0 %1236
  %1238 = vrot.lane.b32.xlu0 %v137, 112
  %v1239 = vpop.permute.xlu0 %1238
  %1240 = vrot.lane.b32.xlu0 %v138, 112
  %v1241 = vpop.permute.xlu0 %1240
  %1242 = vrot.lane.b32.xlu0 %v139, 112
  %v1243 = vpop.permute.xlu0 %1242
  %1244 = vrot.lane.b32.xlu0 %v140, 112
  %v1245 = vpop.permute.xlu0 %1244
  %1246 = vrot.lane.b32.xlu0 %v141, 112
  %v1247 = vpop.permute.xlu0 %1246
  %1248 = vrot.lane.b32.xlu0 %v142, 112
  %v1249 = vpop.permute.xlu0 %1248
  %1250 = vrot.lane.b32.xlu0 %v143, 112
  %v1251 = vpop.permute.xlu0 %1250
  %1252 = vrot.lane.b32.xlu0 %v144, 112
  %v1253 = vpop.permute.xlu0 %1252
  %1254 = vrot.lane.b32.xlu0 %v145, 112
  %v1255 = vpop.permute.xlu0 %1254
  %1256 = vrot.lane.b32.xlu0 %v146, 112
  %v1257 = vpop.permute.xlu0 %1256
  %1258 = vrot.lane.b32.xlu0 %v147, 112
  %v1259 = vpop.permute.xlu0 %1258
  %1260 = vrot.lane.b32.xlu0 %v148, 112
  %v1261 = vpop.permute.xlu0 %1260
  %1262 = vrot.lane.b32.xlu0 %v149, 112
  %v1263 = vpop.permute.xlu0 %1262
  %1264 = vrot.lane.b32.xlu0 %v150, 112
  %v1265 = vpop.permute.xlu0 %1264
  %1266 = vrot.lane.b32.xlu0 %v151, 112
  %v1267 = vpop.permute.xlu0 %1266
  %1284 = vmatprep.subr.mxu0 0.0
  %1285 = vmatpush1.msra.mxu0 %v1267
  %1286 = vmatprep.subr.mxu0 0.0
  %1287 = vmatpush1.msra.mxu0 %v1265
  %1288 = vmatprep.subr.mxu0 0.0
  %1289 = vmatpush1.msra.mxu0 %v1263
  %1290 = vmatprep.subr.mxu0 0.0
  %1291 = vmatpush1.msra.mxu0 %v1261
  %1292 = vmatprep.subr.mxu0 0.0
  %1293 = vmatpush1.msra.mxu0 %v1259
  %1294 = vmatprep.subr.mxu0 0.0
  %1295 = vmatpush1.msra.mxu0 %v1257
  %1296 = vmatprep.subr.mxu0 0.0
  %1297 = vmatpush1.msra.mxu0 %v1255
  %1298 = vmatprep.subr.mxu0 0.0
  %1299 = vmatpush1.msra.mxu0 %v1253
  %1300 = vmatprep.subr.mxu0 0.0
  %1301 = vmatpush1.msra.mxu0 %v1251
  %1302 = vmatprep.subr.mxu0 0.0
  %1303 = vmatpush1.msra.mxu0 %v1249
  %1304 = vmatprep.subr.mxu0 0.0
  %1305 = vmatpush1.msra.mxu0 %v1247
  %1306 = vmatprep.subr.mxu0 0.0
  %1307 = vmatpush1.msra.mxu0 %v1245
  %1308 = vmatprep.subr.mxu0 0.0
  %1309 = vmatpush1.msra.mxu0 %v1243
  %1310 = vmatprep.subr.mxu0 0.0
  %1311 = vmatpush1.msra.mxu0 %v1241
  %1312 = vmatprep.subr.mxu0 0.0
  %1313 = vmatpush1.msra.mxu0 %v1239
  %1314 = vmatprep.subr.mxu0 0.0
  %1315 = vmatpush1.msra.mxu0 %v1237
  %1316 = vmatprep.subr.mxu0 0.0
  %1317 = vmatpush2.msra.mxu0 0.0
  %1318 = vmatprep.subr.mxu0 0.0
  %1319 = vmatpush2.msra.mxu0 0.0
  %1320 = vmatprep.subr.mxu0 0.0
  %1321 = vmatpush2.msra.mxu0 0.0
  %1322 = vmatprep.subr.mxu0 0.0
  %1323 = vmatpush2.msra.mxu0 0.0
  %1324 = vmatprep.subr.mxu0 0.0
  %1325 = vmatpush2.msra.mxu0 0.0
  %1326 = vmatprep.subr.mxu0 0.0
  %1327 = vmatpush2.msra.mxu0 0.0
  %1328 = vmatprep.subr.mxu0 0.0
  %1329 = vmatpush2.msra.mxu0 0.0
  %1330 = vmatprep.subr.mxu0 0.0
  %1331 = vmatpush2.msra.mxu0 0.0
  %1332 = vmatprep.subr.mxu0 0.0
  %1333 = vmatpush2.msra.mxu0 0.0
  %1334 = vmatprep.subr.mxu0 0.0
  %1335 = vmatpush2.msra.mxu0 0.0
  %1336 = vmatprep.subr.mxu0 0.0
  %1337 = vmatpush2.msra.mxu0 0.0
  %1338 = vmatprep.subr.mxu0 0.0
  %1339 = vmatpush2.msra.mxu0 0.0
  %1340 = vmatprep.subr.mxu0 0.0
  %1341 = vmatpush2.msra.mxu0 0.0
  %1342 = vmatprep.subr.mxu0 0.0
  %1343 = vmatpush2.msra.mxu0 0.0
  %1344 = vmatprep.subr.mxu0 0.0
  %1345 = vmatpush2.msra.mxu0 0.0
  %1346 = vmatprep.subr.mxu0 0.0
  %1347 = vmatpush2.msra.mxu0 0.0
  %1348 = vmatprep.mubr.f32.mxu0 0.0
  %1349 = vmatmul.mubr.f32.gmra.mxu0 %v1232
  %v1350 = vpop.f32.mrf.mxu0
  %v1351 = vadd.f32 0.0, %v1350
  %v1352 = vpop.f32.mrf.mxu0
  %1353 = vmatprep.mubr.f32.mxu0 0.0
  %1354 = vmatmul.mubr.f32.gmra.mxu0 %v1233
  %v1355 = vpop.f32.mrf.mxu0
  %v1356 = vadd.f32 0.0, %v1355
  %v1357 = vpop.f32.mrf.mxu0
  %1358 = vmatprep.mubr.f32.mxu0 0.0
  %1359 = vmatmul.mubr.f32.gmra.mxu0 %v1234
  %v1360 = vpop.f32.mrf.mxu0
  %v1361 = vadd.f32 0.0, %v1360
  %v1362 = vpop.f32.mrf.mxu0
  %1363 = vmatprep.mubr.f32.mxu0 0.0
  %1364 = vmatmul.mubr.f32.gmra.mxu0 %v1235
  %v1365 = vpop.f32.mrf.mxu0
  %v1366 = vadd.f32 0.0, %v1365
  %v1367 = vpop.f32.mrf.mxu0
  %1368 = vdwg.mxu0
  %vm1369 = vmand %vm129, %vm131
  %v1370 = vsel %vm1369, 1, 0
  %vm1371 = vcmp.eq.s32.totalorder %v1370, 1
  %v1372 = vsel %vm1371, %v1351, 0.0
  %v1373 = vsel %vm1371, %v1356, 0.0
  %v1374 = vsel %vm1371, %v1361, 0.0
  %v1375 = vsel %vm1371, %v1366, 0.0
  %v1376 = vadd.f32 %v1228, %v1372
  %v1377 = vadd.f32 %v1229, %v1373
  %v1378 = vadd.f32 %v1230, %v1374
  %v1379 = vadd.f32 %v1231, %v1375
  %vm1380 = vcmask 400384
  %1381 = vst.msk [vmem:[%s2] sm:$0xff] %vm1380, %v1376
  %1382 = vst.msk [vmem:[%s2 + $0x8] sm:$0xff] %vm1380, %v1377
  %1383 = vst.msk [vmem:[%s2 + $0x10] sm:$0xff] %vm1380, %v1378
  %1384 = vst.msk [vmem:[%s2 + $0x18] sm:$0xff] %vm1380, %v1379
  // Predicated region
  $region10: #{conv2d_3x3_pallas.1} parent=0 // pred_check
    _
  $region11: #{conv2d_3x3_pallas.1} parent=0 // pred_check_branch
    %1386 = sbr.rel (0) target = $region13
  $region12: #{conv2d_3x3_pallas.1} parent=0 // pred_region
    _
  $region13: #{conv2d_3x3_pallas.1} parent=0 // pred_fallthru
    _
  // Predicated region
  $region14: #{conv2d_3x3_pallas.1} parent=0 // pred_check
    _
  $region15: #{conv2d_3x3_pallas.1} parent=0 // pred_check_branch
    %1388 = sbr.rel (0) target = $region17
  $region16: #{conv2d_3x3_pallas.1} parent=0 // pred_region
    _
  $region17: #{conv2d_3x3_pallas.1} parent=0 // pred_fallthru
    _

</llo_original>
